<compile_context>
chip_gen: v5e
topology: v5e:2x2
jax: 0.10.0
libtpu: 0.0.40
codegen_flags: <defaults>
</compile_context>

<pallas_src>
import functools

import jax
import jax.numpy as jnp
from jax.experimental import pallas as pl
from jax.experimental.pallas import tpu as pltpu


# ----------------------------------------------------------------------------
# Fused Pallas kernel: QKV projection + multi-head SDPA + output projection
# ----------------------------------------------------------------------------
def _fused_cross_attn_kernel(rows_ref, w_ref, b_ref, o_ref, *,
                             num_heads, n_batch, ln):
    # rows_ref: (LN + SN, E)  query rows [:LN], key/value rows [LN:];
    #           rows are batch-interleaved: r = pos * N + n
    # w_ref   : (E, 4E)  [ wq_t*scale | wk_t | wv_t | wo_t ]   (pre-transposed)
    # b_ref   : (1, 4E)  [ bq*scale   | bk   | bv   | bo   ]
    # o_ref   : (LN, E)
    E = w_ref.shape[0]
    H = num_heads
    D = E // H
    LN = ln
    SN = rows_ref.shape[0] - LN

    rows = rows_ref[...]                                     # (LN+SN, E) fp32

    # ---- Single fused input projection: Q|K|V in one MXU matmul -----------
    proj = jnp.dot(rows, w_ref[:, :3 * E],
                   preferred_element_type=jnp.float32) + b_ref[:, :3 * E]
    q = proj[:LN, :E]                   # scale already folded into wq / bq
    k = proj[LN:, E:2 * E]
    v = proj[LN:, 2 * E:3 * E]

    wo = w_ref[:, 3 * E:]               # (E, E) output projection (transposed)

    # ---- Block-diagonal batch mask: query row r and key col c interact iff
    #      r % N == c % N (matches the (seq, batch, E) -> (seq*batch, E) view).
    row_b = jax.lax.broadcasted_iota(jnp.int32, (LN, SN), 0) % n_batch
    col_b = jax.lax.broadcasted_iota(jnp.int32, (LN, SN), 1) % n_batch
    same_batch = row_b == col_b
    neg_big = jnp.float32(-1e30)

    # ---- Per-head attention, accumulating directly through wo row slices --
    acc = jnp.zeros((LN, E), jnp.float32)
    for h in range(H):
        lo = h * D
        qh = q[:, lo:lo + D]                                  # (LN, D)
        kh = k[:, lo:lo + D]                                  # (SN, D)
        vh = v[:, lo:lo + D]                                  # (SN, D)

        # scores = qh @ kh^T (contract last dims; no transposed K materialized)
        s = jax.lax.dot_general(qh, kh, (((1,), (1,)), ((), ())),
                                preferred_element_type=jnp.float32)  # (LN, SN)
        s = jnp.where(same_batch, s, neg_big)

        m = jnp.max(s, axis=-1, keepdims=True)
        p = jnp.exp(s - m)
        denom = jnp.sum(p, axis=-1, keepdims=True)
        # EUP approximate reciprocal + one Newton-Raphson step (VPU) keeps
        # fp32-level accuracy while avoiding the full-precision divide path.
        r = pl.reciprocal(denom, approx=True)
        r = r * (2.0 - denom * r)
        attn = p * r

        oh = jnp.dot(attn, vh, preferred_element_type=jnp.float32)   # (LN, D)
        # wo row slice starts at a multiple of D=8: sublane-aligned, free.
        acc = acc + jnp.dot(oh, wo[lo:lo + D, :],
                            preferred_element_type=jnp.float32)      # (LN, E)

    out = acc + b_ref[:, 3 * E:]
    o_ref[...] = out.astype(o_ref.dtype)


# ----------------------------------------------------------------------------
# CrossAttention forward (== nn.MultiheadAttention(q, k, v)[0])
# ----------------------------------------------------------------------------
def cross_attention_forward(input_x, condition, params, num_heads, attn_mask=None):
    """
    input_x  : (L, N, E)  query
    condition: (S, N, E)  key / value
    returns  : (L, N, E)
    """
    # TODO(synk): attn_mask / need_weights are not supported in this kernel
    #             (the module's forward is exercised with attn_mask=None).
    assert attn_mask is None

    L, N, E = input_x.shape
    S = condition.shape[0]
    H = num_heads
    D = E // H
    scale = 1.0 / (D ** 0.5)

    w_in = params["in_proj_weight"]       # (3E, E)
    b_in = params["in_proj_bias"]         # (3E,)
    w_out = params["out_proj_weight"]     # (E, E)
    b_out = params["out_proj_bias"]       # (E,)

    # Parameter prep: pre-transpose so the kernel never transposes weights,
    # fold the 1/sqrt(D) softmax scale into the Q projection, and pack all
    # weights / biases into one slab each (fewer kernel inputs / DMAs).
    w_slab = jnp.concatenate(
        [w_in[:E].T * scale, w_in[E:2 * E].T, w_in[2 * E:].T, w_out.T],
        axis=1)                                               # (E, 4E)
    b_slab = jnp.concatenate(
        [b_in[:E] * scale, b_in[E:], b_out]).reshape(1, 4 * E)  # (1, 4E)

    # Row-concatenate query and key/value token streams -> one fused projection.
    rows = jnp.concatenate(
        [input_x.reshape(L * N, E), condition.reshape(S * N, E)], axis=0)

    kernel = functools.partial(
        _fused_cross_attn_kernel, num_heads=H, n_batch=N, ln=L * N)

    out2d = pl.pallas_call(
        kernel,
        out_shape=jax.ShapeDtypeStruct((L * N, E), input_x.dtype),
        in_specs=[pl.BlockSpec(memory_space=pltpu.MemorySpace.VMEM)] * 3,
        out_specs=pl.BlockSpec(memory_space=pltpu.MemorySpace.VMEM),
    )(rows, w_slab, b_slab)
    return out2d.reshape(L, N, E)


# ----------------------------------------------------------------------------
# Plain-JAX reference (mirrors torch.nn.MultiheadAttention forward)
# ----------------------------------------------------------------------------
def reference_forward(input_x, condition, params, num_heads):
    L, N, E = input_x.shape
    S = condition.shape[0]
    H = num_heads
    D = E // H
    w_in, b_in = params["in_proj_weight"], params["in_proj_bias"]
    wq, wk, wv = w_in[:E], w_in[E:2 * E], w_in[2 * E:]
    bq, bk, bv = b_in[:E], b_in[E:2 * E], b_in[2 * E:]

    q = input_x @ wq.T + bq
    k = condition @ wk.T + bk
    v = condition @ wv.T + bv

    q = q.reshape(L, N * H, D).transpose(1, 0, 2) / (D ** 0.5)
    k = k.reshape(S, N * H, D).transpose(1, 0, 2)
    v = v.reshape(S, N * H, D).transpose(1, 0, 2)

    s = jnp.einsum("bld,bsd->bls", q, k)
    p = jax.nn.softmax(s, axis=-1)
    o = jnp.einsum("bls,bsd->bld", p, v)               # (N*H, L, D)
    o = o.transpose(1, 0, 2).reshape(L * N, E)
    out = o @ params["out_proj_weight"].T + params["out_proj_bias"]
    return out.reshape(L, N, E)


# ----------------------------------------------------------------------------
# Main
# ----------------------------------------------------------------------------
if __name__ == "__main__":
    # Small shapes consistent with the module: embed_dim=32, num_heads=4.
    L, S, N, E, H = 8, 12, 2, 32, 4

    key = jax.random.PRNGKey(0)
    k0, k1, k2, k3, k4, k5 = jax.random.split(key, 6)

    # Deterministic synthetic parameters (nn.MultiheadAttention shapes).
    params = {
        "in_proj_weight":  jax.random.normal(k0, (3 * E, E), jnp.float32) * 0.05,
        "in_proj_bias":    jax.random.normal(k1, (3 * E,),   jnp.float32) * 0.05,
        "out_proj_weight": jax.random.normal(k2, (E, E),     jnp.float32) * 0.05,
        "out_proj_bias":   jax.random.normal(k3, (E,),       jnp.float32) * 0.05,
    }

    input_x = jax.random.normal(k4, (L, N, E), jnp.float32)     # query
    condition = jax.random.normal(k5, (S, N, E), jnp.float32)   # key / value

    fwd = jax.jit(cross_attention_forward, static_argnums=(3,))
    out = fwd(input_x, condition, params, H)
    out = jax.block_until_ready(out)

    ref = reference_forward(input_x, condition, params, H)
    assert out.shape == (L, N, E)
    assert jnp.allclose(out, ref, atol=1e-4, rtol=1e-4), "mismatch vs reference"

    print("KERNEL_OK")
</pallas_src>

<mosaic_0001>
module attributes {stable_mosaic.version = 11 : i64} {
  func.func @_fused_cross_attn_kernel(%arg0: memref<40x32xf32, #tpu.memory_space<vmem>>, %arg1: memref<32x128xf32, #tpu.memory_space<vmem>>, %arg2: memref<1x128xf32, #tpu.memory_space<vmem>>, %arg3: memref<16x32xf32, #tpu.memory_space<vmem>>) attributes {dimension_semantics = [], scalar_prefetch = 0 : i64, scratch_operands = 0 : i64, tpu.core_type = #tpu.core_type<tc>} {
    %c0 = arith.constant 0 : index
    %c0_0 = arith.constant 0 : index
    %0 = vector.load %arg0[%c0, %c0_0] : memref<40x32xf32, #tpu.memory_space<vmem>>, vector<40x32xf32>
    %c0_1 = arith.constant 0 : index
    %c0_2 = arith.constant 0 : index
    %1 = vector.load %arg1[%c0_1, %c0_2] : memref<32x128xf32, #tpu.memory_space<vmem>>, vector<32x96xf32>
    %cst = arith.constant dense<0.000000e+00> : vector<40x96xf32>
    %2 = tpu.matmul %0, %1, %cst {dimension_numbers = #tpu.dot_dimension_numbers<[1], [0], [0], [1], [0, 0, 1, 1], [], []>} : vector<40x32xf32>, vector<32x96xf32>, vector<40x96xf32> -> vector<40x96xf32>
    %c0_3 = arith.constant 0 : index
    %c0_4 = arith.constant 0 : index
    %3 = vector.load %arg2[%c0_3, %c0_4] : memref<1x128xf32, #tpu.memory_space<vmem>>, vector<1x96xf32>
    %4 = vector.broadcast %3 : vector<1x96xf32> to vector<40x96xf32>
    %5 = arith.addf %2, %4 : vector<40x96xf32>
    %6 = vector.extract_strided_slice %5 {offsets = [0, 0], sizes = [16, 32], strides = [1, 1]} : vector<40x96xf32> to vector<16x32xf32>
    %7 = vector.extract_strided_slice %5 {offsets = [16, 32], sizes = [24, 32], strides = [1, 1]} : vector<40x96xf32> to vector<24x32xf32>
    %8 = vector.extract_strided_slice %5 {offsets = [16, 64], sizes = [24, 32], strides = [1, 1]} : vector<40x96xf32> to vector<24x32xf32>
    %c0_5 = arith.constant 0 : index
    %c96 = arith.constant 96 : index
    %9 = vector.load %arg1[%c0_5, %c96] : memref<32x128xf32, #tpu.memory_space<vmem>>, vector<32x32xf32>
    %10 = tpu.iota {dimensions = array<i32: 0>} : vector<16x24xi32>
    %c2_i32 = arith.constant 2 : i32
    %c0_i32 = arith.constant 0 : i32
    %11 = arith.cmpi eq, %c2_i32, %c0_i32 : i32
    %c1_i32 = arith.constant 1 : i32
    %12 = arith.select %11, %c1_i32, %c2_i32 : i32
    %13 = vector.broadcast %12 : i32 to vector<16x24xi32>
    %14 = arith.remsi %10, %13 : vector<16x24xi32>
    %c0_i32_6 = arith.constant 0 : i32
    %15 = vector.broadcast %c0_i32_6 : i32 to vector<16x24xi32>
    %16 = arith.cmpi ne, %14, %15 : vector<16x24xi32>
    %c0_i32_7 = arith.constant 0 : i32
    %17 = vector.broadcast %c0_i32_7 : i32 to vector<16x24xi32>
    %18 = arith.cmpi slt, %14, %17 : vector<16x24xi32>
    %c0_i32_8 = arith.constant 0 : i32
    %19 = arith.cmpi slt, %12, %c0_i32_8 : i32
    %20 = vector.broadcast %19 : i1 to vector<16x24xi1>
    %21 = vector.broadcast %20 : vector<16x24xi1> to vector<16x24xi1>
    %22 = arith.xori %18, %21 : vector<16x24xi1>
    %23 = arith.andi %22, %16 : vector<16x24xi1>
    %24 = vector.broadcast %12 : i32 to vector<16x24xi32>
    %25 = arith.addi %14, %24 : vector<16x24xi32>
    %26 = arith.select %23, %25, %14 : vector<16x24xi1>, vector<16x24xi32>
    %27 = tpu.iota {dimensions = array<i32: 1>} : vector<16x24xi32>
    %c2_i32_9 = arith.constant 2 : i32
    %c0_i32_10 = arith.constant 0 : i32
    %28 = arith.cmpi eq, %c2_i32_9, %c0_i32_10 : i32
    %c1_i32_11 = arith.constant 1 : i32
    %29 = arith.select %28, %c1_i32_11, %c2_i32_9 : i32
    %30 = vector.broadcast %29 : i32 to vector<16x24xi32>
    %31 = arith.remsi %27, %30 : vector<16x24xi32>
    %c0_i32_12 = arith.constant 0 : i32
    %32 = vector.broadcast %c0_i32_12 : i32 to vector<16x24xi32>
    %33 = arith.cmpi ne, %31, %32 : vector<16x24xi32>
    %c0_i32_13 = arith.constant 0 : i32
    %34 = vector.broadcast %c0_i32_13 : i32 to vector<16x24xi32>
    %35 = arith.cmpi slt, %31, %34 : vector<16x24xi32>
    %c0_i32_14 = arith.constant 0 : i32
    %36 = arith.cmpi slt, %29, %c0_i32_14 : i32
    %37 = vector.broadcast %36 : i1 to vector<16x24xi1>
    %38 = vector.broadcast %37 : vector<16x24xi1> to vector<16x24xi1>
    %39 = arith.xori %35, %38 : vector<16x24xi1>
    %40 = arith.andi %39, %33 : vector<16x24xi1>
    %41 = vector.broadcast %29 : i32 to vector<16x24xi32>
    %42 = arith.addi %31, %41 : vector<16x24xi32>
    %43 = arith.select %40, %42, %31 : vector<16x24xi1>, vector<16x24xi32>
    %44 = arith.cmpi eq, %26, %43 : vector<16x24xi32>
    %cst_15 = arith.constant 0.000000e+00 : f32
    %45 = vector.broadcast %cst_15 : f32 to vector<16x32xf32>
    %46 = vector.extract_strided_slice %6 {offsets = [0, 0], sizes = [16, 8], strides = [1, 1]} : vector<16x32xf32> to vector<16x8xf32>
    %47 = vector.extract_strided_slice %7 {offsets = [0, 0], sizes = [24, 8], strides = [1, 1]} : vector<24x32xf32> to vector<24x8xf32>
    %48 = vector.extract_strided_slice %8 {offsets = [0, 0], sizes = [24, 8], strides = [1, 1]} : vector<24x32xf32> to vector<24x8xf32>
    %cst_16 = arith.constant dense<0.000000e+00> : vector<16x24xf32>
    %49 = tpu.matmul %46, %47, %cst_16 {dimension_numbers = #tpu.dot_dimension_numbers<[1], [1], [0], [0], [0, 0, 1, 0], [], []>} : vector<16x8xf32>, vector<24x8xf32>, vector<16x24xf32> -> vector<16x24xf32>
    %cst_17 = arith.constant -1.000000e+30 : f32
    %50 = vector.broadcast %cst_17 : f32 to vector<16x24xf32>
    %51 = arith.select %44, %49, %50 : vector<16x24xi1>, vector<16x24xf32>
    %cst_18 = arith.constant dense<0xFF800000> : vector<16xf32>
    %52 = vector.multi_reduction <maximumf>, %51, %cst_18 [1] : vector<16x24xf32> to vector<16xf32>
    %53 = vector.shape_cast %52 : vector<16xf32> to vector<16x1xf32>
    %54 = vector.broadcast %53 : vector<16x1xf32> to vector<16x24xf32>
    %55 = arith.subf %51, %54 : vector<16x24xf32>
    %56 = math.exp %55 : vector<16x24xf32>
    %cst_19 = arith.constant dense<0.000000e+00> : vector<16xf32>
    %57 = vector.multi_reduction <add>, %56, %cst_19 [1] : vector<16x24xf32> to vector<16xf32>
    %58 = vector.shape_cast %57 : vector<16xf32> to vector<16x1xf32>
    %59 = tpu.reciprocal %58 {approx = true} : vector<16x1xf32> -> vector<16x1xf32>
    %60 = arith.mulf %58, %59 : vector<16x1xf32>
    %cst_20 = arith.constant 2.000000e+00 : f32
    %61 = vector.broadcast %cst_20 : f32 to vector<16x1xf32>
    %62 = arith.subf %61, %60 : vector<16x1xf32>
    %63 = arith.mulf %59, %62 : vector<16x1xf32>
    %64 = vector.broadcast %63 : vector<16x1xf32> to vector<16x24xf32>
    %65 = arith.mulf %56, %64 : vector<16x24xf32>
    %cst_21 = arith.constant dense<0.000000e+00> : vector<16x8xf32>
    %66 = tpu.matmul %65, %48, %cst_21 {dimension_numbers = #tpu.dot_dimension_numbers<[1], [0], [0], [1], [0, 0, 1, 1], [], []>} : vector<16x24xf32>, vector<24x8xf32>, vector<16x8xf32> -> vector<16x8xf32>
    %67 = vector.extract_strided_slice %9 {offsets = [0, 0], sizes = [8, 32], strides = [1, 1]} : vector<32x32xf32> to vector<8x32xf32>
    %cst_22 = arith.constant dense<0.000000e+00> : vector<16x32xf32>
    %68 = tpu.matmul %66, %67, %cst_22 {dimension_numbers = #tpu.dot_dimension_numbers<[1], [0], [0], [1], [0, 0, 1, 1], [], []>} : vector<16x8xf32>, vector<8x32xf32>, vector<16x32xf32> -> vector<16x32xf32>
    %69 = arith.addf %45, %68 : vector<16x32xf32>
    %70 = vector.extract_strided_slice %6 {offsets = [0, 8], sizes = [16, 8], strides = [1, 1]} : vector<16x32xf32> to vector<16x8xf32>
    %71 = vector.extract_strided_slice %7 {offsets = [0, 8], sizes = [24, 8], strides = [1, 1]} : vector<24x32xf32> to vector<24x8xf32>
    %72 = vector.extract_strided_slice %8 {offsets = [0, 8], sizes = [24, 8], strides = [1, 1]} : vector<24x32xf32> to vector<24x8xf32>
    %cst_23 = arith.constant dense<0.000000e+00> : vector<16x24xf32>
    %73 = tpu.matmul %70, %71, %cst_23 {dimension_numbers = #tpu.dot_dimension_numbers<[1], [1], [0], [0], [0, 0, 1, 0], [], []>} : vector<16x8xf32>, vector<24x8xf32>, vector<16x24xf32> -> vector<16x24xf32>
    %cst_24 = arith.constant -1.000000e+30 : f32
    %74 = vector.broadcast %cst_24 : f32 to vector<16x24xf32>
    %75 = arith.select %44, %73, %74 : vector<16x24xi1>, vector<16x24xf32>
    %cst_25 = arith.constant dense<0xFF800000> : vector<16xf32>
    %76 = vector.multi_reduction <maximumf>, %75, %cst_25 [1] : vector<16x24xf32> to vector<16xf32>
    %77 = vector.shape_cast %76 : vector<16xf32> to vector<16x1xf32>
    %78 = vector.broadcast %77 : vector<16x1xf32> to vector<16x24xf32>
    %79 = arith.subf %75, %78 : vector<16x24xf32>
    %80 = math.exp %79 : vector<16x24xf32>
    %cst_26 = arith.constant dense<0.000000e+00> : vector<16xf32>
    %81 = vector.multi_reduction <add>, %80, %cst_26 [1] : vector<16x24xf32> to vector<16xf32>
    %82 = vector.shape_cast %81 : vector<16xf32> to vector<16x1xf32>
    %83 = tpu.reciprocal %82 {approx = true} : vector<16x1xf32> -> vector<16x1xf32>
    %84 = arith.mulf %82, %83 : vector<16x1xf32>
    %cst_27 = arith.constant 2.000000e+00 : f32
    %85 = vector.broadcast %cst_27 : f32 to vector<16x1xf32>
    %86 = arith.subf %85, %84 : vector<16x1xf32>
    %87 = arith.mulf %83, %86 : vector<16x1xf32>
    %88 = vector.broadcast %87 : vector<16x1xf32> to vector<16x24xf32>
    %89 = arith.mulf %80, %88 : vector<16x24xf32>
    %cst_28 = arith.constant dense<0.000000e+00> : vector<16x8xf32>
    %90 = tpu.matmul %89, %72, %cst_28 {dimension_numbers = #tpu.dot_dimension_numbers<[1], [0], [0], [1], [0, 0, 1, 1], [], []>} : vector<16x24xf32>, vector<24x8xf32>, vector<16x8xf32> -> vector<16x8xf32>
    %91 = vector.extract_strided_slice %9 {offsets = [8, 0], sizes = [8, 32], strides = [1, 1]} : vector<32x32xf32> to vector<8x32xf32>
    %cst_29 = arith.constant dense<0.000000e+00> : vector<16x32xf32>
    %92 = tpu.matmul %90, %91, %cst_29 {dimension_numbers = #tpu.dot_dimension_numbers<[1], [0], [0], [1], [0, 0, 1, 1], [], []>} : vector<16x8xf32>, vector<8x32xf32>, vector<16x32xf32> -> vector<16x32xf32>
    %93 = arith.addf %69, %92 : vector<16x32xf32>
    %94 = vector.extract_strided_slice %6 {offsets = [0, 16], sizes = [16, 8], strides = [1, 1]} : vector<16x32xf32> to vector<16x8xf32>
    %95 = vector.extract_strided_slice %7 {offsets = [0, 16], sizes = [24, 8], strides = [1, 1]} : vector<24x32xf32> to vector<24x8xf32>
    %96 = vector.extract_strided_slice %8 {offsets = [0, 16], sizes = [24, 8], strides = [1, 1]} : vector<24x32xf32> to vector<24x8xf32>
    %cst_30 = arith.constant dense<0.000000e+00> : vector<16x24xf32>
    %97 = tpu.matmul %94, %95, %cst_30 {dimension_numbers = #tpu.dot_dimension_numbers<[1], [1], [0], [0], [0, 0, 1, 0], [], []>} : vector<16x8xf32>, vector<24x8xf32>, vector<16x24xf32> -> vector<16x24xf32>
    %cst_31 = arith.constant -1.000000e+30 : f32
    %98 = vector.broadcast %cst_31 : f32 to vector<16x24xf32>
    %99 = arith.select %44, %97, %98 : vector<16x24xi1>, vector<16x24xf32>
    %cst_32 = arith.constant dense<0xFF800000> : vector<16xf32>
    %100 = vector.multi_reduction <maximumf>, %99, %cst_32 [1] : vector<16x24xf32> to vector<16xf32>
    %101 = vector.shape_cast %100 : vector<16xf32> to vector<16x1xf32>
    %102 = vector.broadcast %101 : vector<16x1xf32> to vector<16x24xf32>
    %103 = arith.subf %99, %102 : vector<16x24xf32>
    %104 = math.exp %103 : vector<16x24xf32>
    %cst_33 = arith.constant dense<0.000000e+00> : vector<16xf32>
    %105 = vector.multi_reduction <add>, %104, %cst_33 [1] : vector<16x24xf32> to vector<16xf32>
    %106 = vector.shape_cast %105 : vector<16xf32> to vector<16x1xf32>
    %107 = tpu.reciprocal %106 {approx = true} : vector<16x1xf32> -> vector<16x1xf32>
    %108 = arith.mulf %106, %107 : vector<16x1xf32>
    %cst_34 = arith.constant 2.000000e+00 : f32
    %109 = vector.broadcast %cst_34 : f32 to vector<16x1xf32>
    %110 = arith.subf %109, %108 : vector<16x1xf32>
    %111 = arith.mulf %107, %110 : vector<16x1xf32>
    %112 = vector.broadcast %111 : vector<16x1xf32> to vector<16x24xf32>
    %113 = arith.mulf %104, %112 : vector<16x24xf32>
    %cst_35 = arith.constant dense<0.000000e+00> : vector<16x8xf32>
    %114 = tpu.matmul %113, %96, %cst_35 {dimension_numbers = #tpu.dot_dimension_numbers<[1], [0], [0], [1], [0, 0, 1, 1], [], []>} : vector<16x24xf32>, vector<24x8xf32>, vector<16x8xf32> -> vector<16x8xf32>
    %115 = vector.extract_strided_slice %9 {offsets = [16, 0], sizes = [8, 32], strides = [1, 1]} : vector<32x32xf32> to vector<8x32xf32>
    %cst_36 = arith.constant dense<0.000000e+00> : vector<16x32xf32>
    %116 = tpu.matmul %114, %115, %cst_36 {dimension_numbers = #tpu.dot_dimension_numbers<[1], [0], [0], [1], [0, 0, 1, 1], [], []>} : vector<16x8xf32>, vector<8x32xf32>, vector<16x32xf32> -> vector<16x32xf32>
    %117 = arith.addf %93, %116 : vector<16x32xf32>
    %118 = vector.extract_strided_slice %6 {offsets = [0, 24], sizes = [16, 8], strides = [1, 1]} : vector<16x32xf32> to vector<16x8xf32>
    %119 = vector.extract_strided_slice %7 {offsets = [0, 24], sizes = [24, 8], strides = [1, 1]} : vector<24x32xf32> to vector<24x8xf32>
    %120 = vector.extract_strided_slice %8 {offsets = [0, 24], sizes = [24, 8], strides = [1, 1]} : vector<24x32xf32> to vector<24x8xf32>
    %cst_37 = arith.constant dense<0.000000e+00> : vector<16x24xf32>
    %121 = tpu.matmul %118, %119, %cst_37 {dimension_numbers = #tpu.dot_dimension_numbers<[1], [1], [0], [0], [0, 0, 1, 0], [], []>} : vector<16x8xf32>, vector<24x8xf32>, vector<16x24xf32> -> vector<16x24xf32>
    %cst_38 = arith.constant -1.000000e+30 : f32
    %122 = vector.broadcast %cst_38 : f32 to vector<16x24xf32>
    %123 = arith.select %44, %121, %122 : vector<16x24xi1>, vector<16x24xf32>
    %cst_39 = arith.constant dense<0xFF800000> : vector<16xf32>
    %124 = vector.multi_reduction <maximumf>, %123, %cst_39 [1] : vector<16x24xf32> to vector<16xf32>
    %125 = vector.shape_cast %124 : vector<16xf32> to vector<16x1xf32>
    %126 = vector.broadcast %125 : vector<16x1xf32> to vector<16x24xf32>
    %127 = arith.subf %123, %126 : vector<16x24xf32>
    %128 = math.exp %127 : vector<16x24xf32>
    %cst_40 = arith.constant dense<0.000000e+00> : vector<16xf32>
    %129 = vector.multi_reduction <add>, %128, %cst_40 [1] : vector<16x24xf32> to vector<16xf32>
    %130 = vector.shape_cast %129 : vector<16xf32> to vector<16x1xf32>
    %131 = tpu.reciprocal %130 {approx = true} : vector<16x1xf32> -> vector<16x1xf32>
    %132 = arith.mulf %130, %131 : vector<16x1xf32>
    %cst_41 = arith.constant 2.000000e+00 : f32
    %133 = vector.broadcast %cst_41 : f32 to vector<16x1xf32>
    %134 = arith.subf %133, %132 : vector<16x1xf32>
    %135 = arith.mulf %131, %134 : vector<16x1xf32>
    %136 = vector.broadcast %135 : vector<16x1xf32> to vector<16x24xf32>
    %137 = arith.mulf %128, %136 : vector<16x24xf32>
    %cst_42 = arith.constant dense<0.000000e+00> : vector<16x8xf32>
    %138 = tpu.matmul %137, %120, %cst_42 {dimension_numbers = #tpu.dot_dimension_numbers<[1], [0], [0], [1], [0, 0, 1, 1], [], []>} : vector<16x24xf32>, vector<24x8xf32>, vector<16x8xf32> -> vector<16x8xf32>
    %139 = vector.extract_strided_slice %9 {offsets = [24, 0], sizes = [8, 32], strides = [1, 1]} : vector<32x32xf32> to vector<8x32xf32>
    %cst_43 = arith.constant dense<0.000000e+00> : vector<16x32xf32>
    %140 = tpu.matmul %138, %139, %cst_43 {dimension_numbers = #tpu.dot_dimension_numbers<[1], [0], [0], [1], [0, 0, 1, 1], [], []>} : vector<16x8xf32>, vector<8x32xf32>, vector<16x32xf32> -> vector<16x32xf32>
    %141 = arith.addf %117, %140 : vector<16x32xf32>
    %c0_44 = arith.constant 0 : index
    %c96_45 = arith.constant 96 : index
    %142 = vector.load %arg2[%c0_44, %c96_45] : memref<1x128xf32, #tpu.memory_space<vmem>>, vector<1x32xf32>
    %143 = vector.broadcast %142 : vector<1x32xf32> to vector<16x32xf32>
    %144 = arith.addf %141, %143 : vector<16x32xf32>
    %c0_46 = arith.constant 0 : index
    %c0_47 = arith.constant 0 : index
    %145 = vector.load %arg3[%c0_46, %c0_47] : memref<16x32xf32, #tpu.memory_space<vmem>>, vector<16x32xf32>
    tpu.vector_store %arg3[%c0_46, %c0_47], %144 {strides = array<i32>} : memref<16x32xf32, #tpu.memory_space<vmem>>, vector<16x32xf32>,
    return
  }
}

</mosaic_0001>

<llo_original>
// kernel: cross_attention_forward.1
$region0: #{cross_attention_forward.1}
  #allocation0 [shape = 'u32[]', space=smem, size = 0x4, offset = 0x4, fixed_abs, tag = 'smem constant byte address 0x4 - core index']
  #allocation1 [shape = 'u32[72,128]{1,0:T(1,128)}', space=vmem, size = 0x9000, scoped, tag = 'internal scratch']
  %s0 = inlined_call_operand.vmem [shape: f32[40,32], index: 0, kind: input, shape index: {}]
  %s1 = inlined_call_operand.vmem [shape: f32[32,128], index: 1, kind: input, shape index: {}]
  %s2 = inlined_call_operand.vmem [shape: f32[1,128], index: 2, kind: input, shape index: {}]
  %s3 = inlined_call_operand.hbm [shape: f32[16,32], index: 3, kind: output, shape index: {}]
  %s4 = sld [smem:[#allocation0]]
  $region22: #{cross_attention_forward.1} parent=0
    _
  %s6 = ssub.s32 1, %s4
  %s7 = scalar_select 0, %s6, %s4
  $region1: #{cross_attention_forward.1} parent=0
    #allocation2 [shape = 'u8[8192]{0}', space=vmem, size = 0x2000, scoped, tag = 'output window, operand 0, single buffered']
    #allocation3 [shape = 's32[1]{0}', space=sflag, size = 0x4, scoped, tag = 'scoped memory for cross_attention_forward.1']
    %8 = vsyncpa [#allocation3], 0
    // Predicated region
    $region2: #{cross_attention_forward.1} parent=1 // pred_check
      _
    $region3: #{cross_attention_forward.1} parent=1 // pred_check_branch
      %10 = sbr.rel (0) target = $region5
    $region4: #{cross_attention_forward.1} parent=1 // pred_region
      _
    $region5: #{cross_attention_forward.1} parent=1 // pred_fallthru
      _
    // Predicated region
    $region6: #{cross_attention_forward.1} parent=1 // pred_check
      _
    $region7: #{cross_attention_forward.1} parent=1 // pred_check_branch
      %12 = sbr.rel (0) target = $region9
    $region8: #{cross_attention_forward.1} parent=1 // pred_region
      _
    $region9: #{cross_attention_forward.1} parent=1 // pred_fallthru
      _
    // Predicated region
    $region10: #{cross_attention_forward.1} parent=1 // pred_check
      _
    $region11: #{cross_attention_forward.1} parent=1 // pred_check_branch
      %14 = sbr.rel (0) target = $region13
    $region12: #{cross_attention_forward.1} parent=1 // pred_region
      _
    $region13: #{cross_attention_forward.1} parent=1 // pred_fallthru
      _
    %v15 = vld [vmem:[%s0] sm:$0xff]
    %v16 = vld [vmem:[%s0 + $0x8] sm:$0xff]
    %v17 = vld [vmem:[%s0 + $0x10] sm:$0xff]
    %v18 = vld [vmem:[%s0 + $0x18] sm:$0xff]
    %v19 = vld [vmem:[%s0 + $0x20] sm:$0xff]
    %v20 = vld [vmem:[%s1] sm:$0xff]
    %v21 = vld [vmem:[%s1 + $0x8] sm:$0xff]
    %v22 = vld [vmem:[%s1 + $0x10] sm:$0xff]
    %v23 = vld [vmem:[%s1 + $0x18] sm:$0xff]
    %v24 = vld [vmem:[%s2] sm:$0x1]
    %v26 = vperm.slane %v24, 0
    %vm28 = vcmask 261120
    %v30 = vsel %vm28, %v15, 0
    %v33 = vsel %vm28, %v16, 0
    %v36 = vsel %vm28, %v17, 0
    %v39 = vsel %vm28, %v18, 0
    %v42 = vsel %vm28, %v19, 0
    %44 = vmatpush.msra.mxu0 0.0
    %45 = vmatpush.msra.mxu0 0.0
    %46 = vmatpush.msra.mxu0 0.0
    %47 = vmatpush.msra.mxu0 0.0
    %48 = vmatpush.msra.mxu0 0.0
    %49 = vmatpush.msra.mxu0 0.0
    %50 = vmatpush.msra.mxu0 0.0
    %51 = vmatpush.msra.mxu0 0.0
    %52 = vmatpush.msra.mxu0 0.0
    %53 = vmatpush.msra.mxu0 0.0
    %54 = vmatpush.msra.mxu0 0.0
    %55 = vmatpush.msra.mxu0 0.0
    %56 = vmatpush.msra.mxu0 %v23
    %57 = vmatpush.msra.mxu0 %v22
    %58 = vmatpush.msra.mxu0 %v21
    %59 = vmatpush.msra.mxu0 %v20
    %60 = vmatmul.f32.gmra.mxu0 %v30
    %v61 = vpop.f32.mrf.mxu0
    %v62 = vadd.f32 %v26, %v61
    %63 = vmatmul.f32.gmra.mxu0 %v33
    %v64 = vpop.f32.mrf.mxu0
    %v65 = vadd.f32 %v26, %v64
    %66 = vmatmul.f32.gmra.mxu0 %v36
    %v67 = vpop.f32.mrf.mxu0
    %v68 = vadd.f32 %v26, %v67
    %69 = vmatmul.f32.gmra.mxu0 %v39
    %v70 = vpop.f32.mrf.mxu0
    %v71 = vadd.f32 %v26, %v70
    %72 = vmatmul.f32.gmra.mxu0 %v42
    %v73 = vpop.f32.mrf.mxu0
    %v74 = vadd.f32 %v26, %v73
    %75 = vdwg.mxu0
    %v76 = vlaneseq
    %v77 = vshrl.u32 %v76, 7
    %v78 = vadd.s32 %v77, 8
    %vm79 = vcmp.lt.s32.totalorder %v77, 0
    %v80 = vsub.s32 0, %v77
    %v81 = vsel %vm79, %v80, %v77
    %v82 = vshrl.u32 %v81, 1
    %v83 = vand.u32 %v81, 1
    %v84 = vsub.s32 0, %v83
    %v85 = vsel %vm79, %v84, %v83
    %vm86 = vcmp.lt.s32.totalorder %v78, 0
    %v87 = vsub.s32 0, %v78
    %v88 = vsel %vm86, %v87, %v78
    %v89 = vshrl.u32 %v88, 1
    %v90 = vand.u32 %v88, 1
    %v91 = vsub.s32 0, %v90
    %v92 = vsel %vm86, %v91, %v90
    %vm93 = vcmp.ne.s32.totalorder %v85, 0
    %vm94 = vcmp.ne.s32.totalorder %v92, 0
    %vm95 = vcmp.lt.s32.totalorder %v85, 0
    %vm96 = vcmp.lt.s32.totalorder %v92, 0
    %vm97 = vmand %vm95, %vm93
    %vm98 = vmand %vm96, %vm94
    %v99 = vadd.s32 %v85, 2
    %v100 = vadd.s32 %v92, 2
    %v101 = vsel %vm97, %v99, %v85
    %v102 = vsel %vm98, %v100, %v92
    %v103 = vlaneseq
    %v104 = vand.u32 %v103, 127
    %vm105 = vcmp.lt.s32.totalorder %v104, 0
    %v106 = vsub.s32 0, %v104
    %v107 = vsel %vm105, %v106, %v104
    %v108 = vshrl.u32 %v107, 1
    %v109 = vand.u32 %v107, 1
    %v110 = vsub.s32 0, %v109
    %v111 = vsel %vm105, %v110, %v109
    %vm112 = vcmp.ne.s32.totalorder %v111, 0
    %vm113 = vcmp.lt.s32.totalorder %v111, 0
    %vm114 = vmand %vm113, %vm112
    %v115 = vadd.s32 %v111, 2
    %v116 = vsel %vm114, %v115, %v111
    %vm117 = vcmp.eq.s32.totalorder %v101, %v116
    %vm118 = vcmp.eq.s32.totalorder %v102, %v116
    %122 = vrot.lane.b32.xlu0 %v68, 96
    %v123 = vpop.permute.xlu0 %122
    %124 = vrot.lane.b32.xlu0 %v71, 96
    %v125 = vpop.permute.xlu0 %124
    %126 = vrot.lane.b32.xlu0 %v74, 96
    %v127 = vpop.permute.xlu0 %126
    %vm128 = vcmask 64512
    %v130 = vsel %vm128, %v62, 0
    %v133 = vsel %vm128, %v65, 0
    %v135 = vsel %vm128, %v123, 0
    %v137 = vsel %vm128, %v125, 0
    %v139 = vsel %vm128, %v127, 0
    %141 = vmatpush.xpose.msra.mxu0 0.0
    %142 = vmatpush.xpose.msra.mxu0 0.0
    %143 = vmatpush.xpose.msra.mxu0 0.0
    %144 = vmatpush.xpose.msra.mxu0 0.0
    %145 = vmatpush.xpose.msra.mxu0 0.0
    %146 = vmatpush.xpose.msra.mxu0 0.0
    %147 = vmatpush.xpose.msra.mxu0 0.0
    %148 = vmatpush.xpose.msra.mxu0 0.0
    %149 = vmatpush.xpose.msra.mxu0 0.0
    %150 = vmatpush.xpose.msra.mxu0 0.0
    %151 = vmatpush.xpose.msra.mxu0 0.0
    %152 = vmatpush.xpose.msra.mxu0 0.0
    %153 = vmatpush.xpose.msra.mxu0 0.0
    %154 = vmatpush.xpose.msra.mxu0 %v139
    %155 = vmatpush.xpose.msra.mxu0 %v137
    %156 = vmatpush.xpose.msra.mxu0 %v135
    %157 = vmatmul.f32.gmra.mxu0 %v130
    %v158 = vpop.f32.mrf.mxu0
    %v159 = vadd.f32 0.0, %v158
    %160 = vmatmul.f32.gmra.mxu0 %v133
    %v161 = vpop.f32.mrf.mxu0
    %v162 = vadd.f32 0.0, %v161
    %163 = vdwg.mxu0
    %v164 = vsel %vm117, %v159, -1e+30
    %v165 = vsel %vm118, %v162, -1e+30
    %vm166 = vcmask 195584
    %v167 = vsel %vm166, %v164, -inf
    %168 = vmax.xlane.f32.xlu0 %v167
    %v169 = vpop.xlane.xlu0 %168
    %v170 = vsel %vm166, %v165, -inf
    %171 = vmax.xlane.f32.xlu0 %v170
    %v172 = vpop.xlane.xlu0 %171
    %v173 = vsub.f32 %v164, %v169
    %v174 = vsub.f32 %v165, %v172
    %v175 = vmul.f32 %v173, 1.442695
    %v176 = vpow.pop %v175
    %v177 = vmul.f32 %v174, 1.442695
    %v178 = vpow.pop %v177
    %v179 = vsel %vm166, %v176, 0.0
    %180 = vadd.xlane.f32.xlu0 %v179
    %v181 = vpop.xlane.xlu0 %180
    %v182 = vsel %vm166, %v178, 0.0
    %183 = vadd.xlane.f32.xlu0 %v182
    %v184 = vpop.xlane.xlu0 %183
    %v185 = vrcp.pop %v181
    %v186 = vrcp.pop %v184
    %v187 = vmul.f32 %v181, %v185
    %v188 = vmul.f32 %v184, %v186
    %v189 = vsub.f32 2.0, %v187
    %v190 = vsub.f32 2.0, %v188
    %v191 = vmul.f32 %v185, %v189
    %v192 = vmul.f32 %v186, %v190
    %v193 = vmul.f32 %v176, %v191
    %v194 = vmul.f32 %v178, %v192
    %195 = vrot.lane.b32.xlu0 %v68, 64
    %v196 = vpop.permute.xlu0 %195
    %197 = vrot.lane.b32.xlu0 %v71, 64
    %v198 = vpop.permute.xlu0 %197
    %199 = vrot.lane.b32.xlu0 %v74, 64
    %v200 = vpop.permute.xlu0 %199
    %v205 = vsel %vm166, %v193, 0
    %v208 = vsel %vm166, %v194, 0
    %210 = vmatpush.msra.mxu0 0.0
    %211 = vmatpush.msra.mxu0 0.0
    %212 = vmatpush.msra.mxu0 0.0
    %213 = vmatpush.msra.mxu0 0.0
    %214 = vmatpush.msra.mxu0 0.0
    %215 = vmatpush.msra.mxu0 0.0
    %216 = vmatpush.msra.mxu0 0.0
    %217 = vmatpush.msra.mxu0 0.0
    %218 = vmatpush.msra.mxu0 0.0
    %219 = vmatpush.msra.mxu0 0.0
    %220 = vmatpush.msra.mxu0 0.0
    %221 = vmatpush.msra.mxu0 0.0
    %222 = vmatpush.msra.mxu0 0.0
    %223 = vmatpush.msra.mxu0 %v200
    %224 = vmatpush.msra.mxu0 %v198
    %225 = vmatpush.msra.mxu0 %v196
    %226 = vmatmul.f32.gmra.mxu0 %v205
    %v227 = vpop.f32.mrf.mxu0
    %v228 = vadd.f32 0.0, %v227
    %229 = vmatmul.f32.gmra.mxu0 %v208
    %v230 = vpop.f32.mrf.mxu0
    %v231 = vadd.f32 0.0, %v230
    %232 = vdwg.mxu0
    %233 = vrot.lane.b32.xlu0 %v62, 120
    %v234 = vpop.permute.xlu0 %233
    %235 = vrot.lane.b32.xlu0 %v65, 120
    %v236 = vpop.permute.xlu0 %235
    %237 = vrot.lane.b32.xlu0 %v68, 88
    %v238 = vpop.permute.xlu0 %237
    %239 = vrot.lane.b32.xlu0 %v71, 88
    %v240 = vpop.permute.xlu0 %239
    %241 = vrot.lane.b32.xlu0 %v74, 88
    %v242 = vpop.permute.xlu0 %241
    %v243 = vsel %vm128, %v234, 0
    %v245 = vsel %vm128, %v236, 0
    %v247 = vsel %vm128, %v238, 0
    %v249 = vsel %vm128, %v240, 0
    %v251 = vsel %vm128, %v242, 0
    %253 = vmatpush.xpose.msra.mxu0 0.0
    %254 = vmatpush.xpose.msra.mxu0 0.0
    %255 = vmatpush.xpose.msra.mxu0 0.0
    %256 = vmatpush.xpose.msra.mxu0 0.0
    %257 = vmatpush.xpose.msra.mxu0 0.0
    %258 = vmatpush.xpose.msra.mxu0 0.0
    %259 = vmatpush.xpose.msra.mxu0 0.0
    %260 = vmatpush.xpose.msra.mxu0 0.0
    %261 = vmatpush.xpose.msra.mxu0 0.0
    %262 = vmatpush.xpose.msra.mxu0 0.0
    %263 = vmatpush.xpose.msra.mxu0 0.0
    %264 = vmatpush.xpose.msra.mxu0 0.0
    %265 = vmatpush.xpose.msra.mxu0 0.0
    %266 = vmatpush.xpose.msra.mxu0 %v251
    %267 = vmatpush.xpose.msra.mxu0 %v249
    %268 = vmatpush.xpose.msra.mxu0 %v247
    %269 = vmatmul.f32.gmra.mxu0 %v243
    %v270 = vpop.f32.mrf.mxu0
    %v271 = vadd.f32 0.0, %v270
    %272 = vmatmul.f32.gmra.mxu0 %v245
    %v273 = vpop.f32.mrf.mxu0
    %v274 = vadd.f32 0.0, %v273
    %275 = vdwg.mxu0
    %v276 = vsel %vm117, %v271, -1e+30
    %v277 = vsel %vm118, %v274, -1e+30
    %v278 = vsel %vm166, %v276, -inf
    %279 = vmax.xlane.f32.xlu0 %v278
    %v280 = vpop.xlane.xlu0 %279
    %v281 = vsel %vm166, %v277, -inf
    %282 = vmax.xlane.f32.xlu0 %v281
    %v283 = vpop.xlane.xlu0 %282
    %v284 = vsub.f32 %v276, %v280
    %v285 = vsub.f32 %v277, %v283
    %v286 = vmul.f32 %v284, 1.442695
    %v287 = vpow.pop %v286
    %v288 = vmul.f32 %v285, 1.442695
    %v289 = vpow.pop %v288
    %v290 = vsel %vm166, %v287, 0.0
    %291 = vadd.xlane.f32.xlu0 %v290
    %v292 = vpop.xlane.xlu0 %291
    %v293 = vsel %vm166, %v289, 0.0
    %294 = vadd.xlane.f32.xlu0 %v293
    %v295 = vpop.xlane.xlu0 %294
    %v296 = vrcp.pop %v292
    %v297 = vrcp.pop %v295
    %v298 = vmul.f32 %v292, %v296
    %v299 = vmul.f32 %v295, %v297
    %v300 = vsub.f32 2.0, %v298
    %v301 = vsub.f32 2.0, %v299
    %v302 = vmul.f32 %v296, %v300
    %v303 = vmul.f32 %v297, %v301
    %v304 = vmul.f32 %v287, %v302
    %v305 = vmul.f32 %v289, %v303
    %306 = vrot.lane.b32.xlu0 %v68, 56
    %v307 = vpop.permute.xlu0 %306
    %308 = vrot.lane.b32.xlu0 %v71, 56
    %v309 = vpop.permute.xlu0 %308
    %310 = vrot.lane.b32.xlu0 %v74, 56
    %v311 = vpop.permute.xlu0 %310
    %v316 = vsel %vm166, %v304, 0
    %v319 = vsel %vm166, %v305, 0
    %321 = vmatpush.msra.mxu0 0.0
    %322 = vmatpush.msra.mxu0 0.0
    %323 = vmatpush.msra.mxu0 0.0
    %324 = vmatpush.msra.mxu0 0.0
    %325 = vmatpush.msra.mxu0 0.0
    %326 = vmatpush.msra.mxu0 0.0
    %327 = vmatpush.msra.mxu0 0.0
    %328 = vmatpush.msra.mxu0 0.0
    %329 = vmatpush.msra.mxu0 0.0
    %330 = vmatpush.msra.mxu0 0.0
    %331 = vmatpush.msra.mxu0 0.0
    %332 = vmatpush.msra.mxu0 0.0
    %333 = vmatpush.msra.mxu0 0.0
    %334 = vmatpush.msra.mxu0 %v311
    %335 = vmatpush.msra.mxu0 %v309
    %336 = vmatpush.msra.mxu0 %v307
    %337 = vmatmul.f32.gmra.mxu0 %v316
    %v338 = vpop.f32.mrf.mxu0
    %v339 = vadd.f32 0.0, %v338
    %340 = vmatmul.f32.gmra.mxu0 %v319
    %v341 = vpop.f32.mrf.mxu0
    %v342 = vadd.f32 0.0, %v341
    %343 = vdwg.mxu0
    %345 = vrot.lane.b32.xlu0 %v21, 32
    %v346 = vpop.permute.xlu0 %345
    %v349 = vsel %vm128, %v339, 0
    %v352 = vsel %vm128, %v342, 0
    %354 = vmatpush.msra.mxu0 0.0
    %355 = vmatpush.msra.mxu0 0.0
    %356 = vmatpush.msra.mxu0 0.0
    %357 = vmatpush.msra.mxu0 0.0
    %358 = vmatpush.msra.mxu0 0.0
    %359 = vmatpush.msra.mxu0 0.0
    %360 = vmatpush.msra.mxu0 0.0
    %361 = vmatpush.msra.mxu0 0.0
    %362 = vmatpush.msra.mxu0 0.0
    %363 = vmatpush.msra.mxu0 0.0
    %364 = vmatpush.msra.mxu0 0.0
    %365 = vmatpush.msra.mxu0 0.0
    %366 = vmatpush.msra.mxu0 0.0
    %367 = vmatpush.msra.mxu0 0.0
    %368 = vmatpush.msra.mxu0 0.0
    %369 = vmatpush.msra.mxu0 %v346
    %370 = vmatmul.f32.gmra.mxu0 %v349
    %v371 = vpop.f32.mrf.mxu0
    %v372 = vadd.f32 0.0, %v371
    %373 = vmatmul.f32.gmra.mxu0 %v352
    %v374 = vpop.f32.mrf.mxu0
    %v375 = vadd.f32 0.0, %v374
    %376 = vdwg.mxu0
    %378 = vrot.lane.b32.xlu0 %v20, 32
    %v379 = vpop.permute.xlu0 %378
    %v382 = vsel %vm128, %v228, 0
    %v385 = vsel %vm128, %v231, 0
    %387 = vmatpush.msra.mxu0 0.0
    %388 = vmatpush.msra.mxu0 0.0
    %389 = vmatpush.msra.mxu0 0.0
    %390 = vmatpush.msra.mxu0 0.0
    %391 = vmatpush.msra.mxu0 0.0
    %392 = vmatpush.msra.mxu0 0.0
    %393 = vmatpush.msra.mxu0 0.0
    %394 = vmatpush.msra.mxu0 0.0
    %395 = vmatpush.msra.mxu0 0.0
    %396 = vmatpush.msra.mxu0 0.0
    %397 = vmatpush.msra.mxu0 0.0
    %398 = vmatpush.msra.mxu0 0.0
    %399 = vmatpush.msra.mxu0 0.0
    %400 = vmatpush.msra.mxu0 0.0
    %401 = vmatpush.msra.mxu0 0.0
    %402 = vmatpush.msra.mxu0 %v379
    %403 = vmatmul.f32.gmra.mxu0 %v382
    %v404 = vpop.f32.mrf.mxu0
    %v405 = vadd.f32 %v372, %v404
    %406 = vmatmul.f32.gmra.mxu0 %v385
    %v407 = vpop.f32.mrf.mxu0
    %v408 = vadd.f32 %v375, %v407
    %409 = vdwg.mxu0
    %410 = vrot.lane.b32.xlu0 %v62, 112
    %v411 = vpop.permute.xlu0 %410
    %412 = vrot.lane.b32.xlu0 %v65, 112
    %v413 = vpop.permute.xlu0 %412
    %414 = vrot.lane.b32.xlu0 %v68, 80
    %v415 = vpop.permute.xlu0 %414
    %416 = vrot.lane.b32.xlu0 %v71, 80
    %v417 = vpop.permute.xlu0 %416
    %418 = vrot.lane.b32.xlu0 %v74, 80
    %v419 = vpop.permute.xlu0 %418
    %v420 = vsel %vm128, %v411, 0
    %v422 = vsel %vm128, %v413, 0
    %v424 = vsel %vm128, %v415, 0
    %v426 = vsel %vm128, %v417, 0
    %v428 = vsel %vm128, %v419, 0
    %430 = vmatpush.xpose.msra.mxu0 0.0
    %431 = vmatpush.xpose.msra.mxu0 0.0
    %432 = vmatpush.xpose.msra.mxu0 0.0
    %433 = vmatpush.xpose.msra.mxu0 0.0
    %434 = vmatpush.xpose.msra.mxu0 0.0
    %435 = vmatpush.xpose.msra.mxu0 0.0
    %436 = vmatpush.xpose.msra.mxu0 0.0
    %437 = vmatpush.xpose.msra.mxu0 0.0
    %438 = vmatpush.xpose.msra.mxu0 0.0
    %439 = vmatpush.xpose.msra.mxu0 0.0
    %440 = vmatpush.xpose.msra.mxu0 0.0
    %441 = vmatpush.xpose.msra.mxu0 0.0
    %442 = vmatpush.xpose.msra.mxu0 0.0
    %443 = vmatpush.xpose.msra.mxu0 %v428
    %444 = vmatpush.xpose.msra.mxu0 %v426
    %445 = vmatpush.xpose.msra.mxu0 %v424
    %446 = vmatmul.f32.gmra.mxu0 %v420
    %v447 = vpop.f32.mrf.mxu0
    %v448 = vadd.f32 0.0, %v447
    %449 = vmatmul.f32.gmra.mxu0 %v422
    %v450 = vpop.f32.mrf.mxu0
    %v451 = vadd.f32 0.0, %v450
    %452 = vdwg.mxu0
    %v453 = vsel %vm117, %v448, -1e+30
    %v454 = vsel %vm118, %v451, -1e+30
    %v455 = vsel %vm166, %v453, -inf
    %456 = vmax.xlane.f32.xlu0 %v455
    %v457 = vpop.xlane.xlu0 %456
    %v458 = vsel %vm166, %v454, -inf
    %459 = vmax.xlane.f32.xlu0 %v458
    %v460 = vpop.xlane.xlu0 %459
    %v461 = vsub.f32 %v453, %v457
    %v462 = vsub.f32 %v454, %v460
    %v463 = vmul.f32 %v461, 1.442695
    %v464 = vpow.pop %v463
    %v465 = vmul.f32 %v462, 1.442695
    %v466 = vpow.pop %v465
    %v467 = vsel %vm166, %v464, 0.0
    %468 = vadd.xlane.f32.xlu0 %v467
    %v469 = vpop.xlane.xlu0 %468
    %v470 = vsel %vm166, %v466, 0.0
    %471 = vadd.xlane.f32.xlu0 %v470
    %v472 = vpop.xlane.xlu0 %471
    %v473 = vrcp.pop %v469
    %v474 = vrcp.pop %v472
    %v475 = vmul.f32 %v469, %v473
    %v476 = vmul.f32 %v472, %v474
    %v477 = vsub.f32 2.0, %v475
    %v478 = vsub.f32 2.0, %v476
    %v479 = vmul.f32 %v473, %v477
    %v480 = vmul.f32 %v474, %v478
    %v481 = vmul.f32 %v464, %v479
    %v482 = vmul.f32 %v466, %v480
    %483 = vrot.lane.b32.xlu0 %v68, 48
    %v484 = vpop.permute.xlu0 %483
    %485 = vrot.lane.b32.xlu0 %v71, 48
    %v486 = vpop.permute.xlu0 %485
    %487 = vrot.lane.b32.xlu0 %v74, 48
    %v488 = vpop.permute.xlu0 %487
    %v493 = vsel %vm166, %v481, 0
    %v496 = vsel %vm166, %v482, 0
    %498 = vmatpush.msra.mxu0 0.0
    %499 = vmatpush.msra.mxu0 0.0
    %500 = vmatpush.msra.mxu0 0.0
    %501 = vmatpush.msra.mxu0 0.0
    %502 = vmatpush.msra.mxu0 0.0
    %503 = vmatpush.msra.mxu0 0.0
    %504 = vmatpush.msra.mxu0 0.0
    %505 = vmatpush.msra.mxu0 0.0
    %506 = vmatpush.msra.mxu0 0.0
    %507 = vmatpush.msra.mxu0 0.0
    %508 = vmatpush.msra.mxu0 0.0
    %509 = vmatpush.msra.mxu0 0.0
    %510 = vmatpush.msra.mxu0 0.0
    %511 = vmatpush.msra.mxu0 %v488
    %512 = vmatpush.msra.mxu0 %v486
    %513 = vmatpush.msra.mxu0 %v484
    %514 = vmatmul.f32.gmra.mxu0 %v493
    %v515 = vpop.f32.mrf.mxu0
    %v516 = vadd.f32 0.0, %v515
    %517 = vmatmul.f32.gmra.mxu0 %v496
    %v518 = vpop.f32.mrf.mxu0
    %v519 = vadd.f32 0.0, %v518
    %520 = vdwg.mxu0
    %522 = vrot.lane.b32.xlu0 %v22, 32
    %v523 = vpop.permute.xlu0 %522
    %v526 = vsel %vm128, %v516, 0
    %v529 = vsel %vm128, %v519, 0
    %531 = vmatpush.msra.mxu0 0.0
    %532 = vmatpush.msra.mxu0 0.0
    %533 = vmatpush.msra.mxu0 0.0
    %534 = vmatpush.msra.mxu0 0.0
    %535 = vmatpush.msra.mxu0 0.0
    %536 = vmatpush.msra.mxu0 0.0
    %537 = vmatpush.msra.mxu0 0.0
    %538 = vmatpush.msra.mxu0 0.0
    %539 = vmatpush.msra.mxu0 0.0
    %540 = vmatpush.msra.mxu0 0.0
    %541 = vmatpush.msra.mxu0 0.0
    %542 = vmatpush.msra.mxu0 0.0
    %543 = vmatpush.msra.mxu0 0.0
    %544 = vmatpush.msra.mxu0 0.0
    %545 = vmatpush.msra.mxu0 0.0
    %546 = vmatpush.msra.mxu0 %v523
    %547 = vmatmul.f32.gmra.mxu0 %v526
    %v548 = vpop.f32.mrf.mxu0
    %v549 = vadd.f32 0.0, %v548
    %550 = vmatmul.f32.gmra.mxu0 %v529
    %v551 = vpop.f32.mrf.mxu0
    %v552 = vadd.f32 0.0, %v551
    %553 = vdwg.mxu0
    %v554 = vadd.f32 %v405, %v549
    %v555 = vadd.f32 %v408, %v552
    %556 = vrot.lane.b32.xlu0 %v62, 104
    %v557 = vpop.permute.xlu0 %556
    %558 = vrot.lane.b32.xlu0 %v65, 104
    %v559 = vpop.permute.xlu0 %558
    %560 = vrot.lane.b32.xlu0 %v68, 72
    %v561 = vpop.permute.xlu0 %560
    %562 = vrot.lane.b32.xlu0 %v71, 72
    %v563 = vpop.permute.xlu0 %562
    %564 = vrot.lane.b32.xlu0 %v74, 72
    %v565 = vpop.permute.xlu0 %564
    %v566 = vsel %vm128, %v557, 0
    %v568 = vsel %vm128, %v559, 0
    %v570 = vsel %vm128, %v561, 0
    %v572 = vsel %vm128, %v563, 0
    %v574 = vsel %vm128, %v565, 0
    %576 = vmatpush.xpose.msra.mxu0 0.0
    %577 = vmatpush.xpose.msra.mxu0 0.0
    %578 = vmatpush.xpose.msra.mxu0 0.0
    %579 = vmatpush.xpose.msra.mxu0 0.0
    %580 = vmatpush.xpose.msra.mxu0 0.0
    %581 = vmatpush.xpose.msra.mxu0 0.0
    %582 = vmatpush.xpose.msra.mxu0 0.0
    %583 = vmatpush.xpose.msra.mxu0 0.0
    %584 = vmatpush.xpose.msra.mxu0 0.0
    %585 = vmatpush.xpose.msra.mxu0 0.0
    %586 = vmatpush.xpose.msra.mxu0 0.0
    %587 = vmatpush.xpose.msra.mxu0 0.0
    %588 = vmatpush.xpose.msra.mxu0 0.0
    %589 = vmatpush.xpose.msra.mxu0 %v574
    %590 = vmatpush.xpose.msra.mxu0 %v572
    %591 = vmatpush.xpose.msra.mxu0 %v570
    %592 = vmatmul.f32.gmra.mxu0 %v566
    %v593 = vpop.f32.mrf.mxu0
    %v594 = vadd.f32 0.0, %v593
    %595 = vmatmul.f32.gmra.mxu0 %v568
    %v596 = vpop.f32.mrf.mxu0
    %v597 = vadd.f32 0.0, %v596
    %598 = vdwg.mxu0
    %v599 = vsel %vm117, %v594, -1e+30
    %v600 = vsel %vm118, %v597, -1e+30
    %v601 = vsel %vm166, %v599, -inf
    %602 = vmax.xlane.f32.xlu0 %v601
    %v603 = vpop.xlane.xlu0 %602
    %v604 = vsel %vm166, %v600, -inf
    %605 = vmax.xlane.f32.xlu0 %v604
    %v606 = vpop.xlane.xlu0 %605
    %v607 = vsub.f32 %v599, %v603
    %v608 = vsub.f32 %v600, %v606
    %v609 = vmul.f32 %v607, 1.442695
    %v610 = vpow.pop %v609
    %v611 = vmul.f32 %v608, 1.442695
    %v612 = vpow.pop %v611
    %v613 = vsel %vm166, %v610, 0.0
    %614 = vadd.xlane.f32.xlu0 %v613
    %v615 = vpop.xlane.xlu0 %614
    %v616 = vsel %vm166, %v612, 0.0
    %617 = vadd.xlane.f32.xlu0 %v616
    %v618 = vpop.xlane.xlu0 %617
    %v619 = vrcp.pop %v615
    %v620 = vrcp.pop %v618
    %v621 = vmul.f32 %v615, %v619
    %v622 = vmul.f32 %v618, %v620
    %v623 = vsub.f32 2.0, %v621
    %v624 = vsub.f32 2.0, %v622
    %v625 = vmul.f32 %v619, %v623
    %v626 = vmul.f32 %v620, %v624
    %v627 = vmul.f32 %v610, %v625
    %v628 = vmul.f32 %v612, %v626
    %629 = vrot.lane.b32.xlu0 %v68, 40
    %v630 = vpop.permute.xlu0 %629
    %631 = vrot.lane.b32.xlu0 %v71, 40
    %v632 = vpop.permute.xlu0 %631
    %633 = vrot.lane.b32.xlu0 %v74, 40
    %v634 = vpop.permute.xlu0 %633
    %v639 = vsel %vm166, %v627, 0
    %v642 = vsel %vm166, %v628, 0
    %644 = vmatpush.msra.mxu0 0.0
    %645 = vmatpush.msra.mxu0 0.0
    %646 = vmatpush.msra.mxu0 0.0
    %647 = vmatpush.msra.mxu0 0.0
    %648 = vmatpush.msra.mxu0 0.0
    %649 = vmatpush.msra.mxu0 0.0
    %650 = vmatpush.msra.mxu0 0.0
    %651 = vmatpush.msra.mxu0 0.0
    %652 = vmatpush.msra.mxu0 0.0
    %653 = vmatpush.msra.mxu0 0.0
    %654 = vmatpush.msra.mxu0 0.0
    %655 = vmatpush.msra.mxu0 0.0
    %656 = vmatpush.msra.mxu0 0.0
    %657 = vmatpush.msra.mxu0 %v634
    %658 = vmatpush.msra.mxu0 %v632
    %659 = vmatpush.msra.mxu0 %v630
    %660 = vmatmul.f32.gmra.mxu0 %v639
    %v661 = vpop.f32.mrf.mxu0
    %v662 = vadd.f32 0.0, %v661
    %663 = vmatmul.f32.gmra.mxu0 %v642
    %v664 = vpop.f32.mrf.mxu0
    %v665 = vadd.f32 0.0, %v664
    %666 = vdwg.mxu0
    %668 = vrot.lane.b32.xlu0 %v23, 32
    %v669 = vpop.permute.xlu0 %668
    %v672 = vsel %vm128, %v662, 0
    %v675 = vsel %vm128, %v665, 0
    %677 = vmatpush.msra.mxu0 0.0
    %678 = vmatpush.msra.mxu0 0.0
    %679 = vmatpush.msra.mxu0 0.0
    %680 = vmatpush.msra.mxu0 0.0
    %681 = vmatpush.msra.mxu0 0.0
    %682 = vmatpush.msra.mxu0 0.0
    %683 = vmatpush.msra.mxu0 0.0
    %684 = vmatpush.msra.mxu0 0.0
    %685 = vmatpush.msra.mxu0 0.0
    %686 = vmatpush.msra.mxu0 0.0
    %687 = vmatpush.msra.mxu0 0.0
    %688 = vmatpush.msra.mxu0 0.0
    %689 = vmatpush.msra.mxu0 0.0
    %690 = vmatpush.msra.mxu0 0.0
    %691 = vmatpush.msra.mxu0 0.0
    %692 = vmatpush.msra.mxu0 %v669
    %693 = vmatmul.f32.gmra.mxu0 %v672
    %v694 = vpop.f32.mrf.mxu0
    %v695 = vadd.f32 0.0, %v694
    %696 = vmatmul.f32.gmra.mxu0 %v675
    %v697 = vpop.f32.mrf.mxu0
    %v698 = vadd.f32 0.0, %v697
    %699 = vdwg.mxu0
    %v700 = vadd.f32 %v554, %v695
    %v701 = vadd.f32 %v555, %v698
    %702 = vrot.lane.b32.xlu0 %v26, 32
    %v703 = vpop.permute.xlu0 %702
    %v705 = vadd.f32 %v700, %v703
    %v706 = vadd.f32 %v701, %v703
    %707 = vst.msk [vmem:[#allocation2] sm:$0xff] %vm28, %v705
    %708 = vst.msk [vmem:[#allocation2 + $0x8] sm:$0xff] %vm28, %v706
    // Predicated region
    $region14: #{cross_attention_forward.1} parent=1 // pred_check
      _
    $region15: #{cross_attention_forward.1} parent=1 // pred_check_branch
      %710 = sbr.rel (0) target = $region17
    $region16: #{cross_attention_forward.1} parent=1 // pred_region
      %712 = vsyncadd [#allocation3], 0
      %s713 = sshll.u32 [#allocation2], 4
      %s714 = int_to_ptr.vmem [resolvable:$true] %s713
      %s715 = sshll.u32 %s3, 4
      %s716 = int_to_ptr.hbm [resolvable:$true] %s715
      %721 = dma.vmem_to_hbm [thread:$0]  %s714, 256, %s716, [#allocation3], 128, 128, 8
    $region17: #{cross_attention_forward.1} parent=1 // pred_fallthru
      _
    // Predicated region
    $region18: #{cross_attention_forward.1} parent=1 // pred_check
      _
    $region19: #{cross_attention_forward.1} parent=1 // pred_check_branch
      %723 = sbr.rel (0) target = $region21
    $region20: #{cross_attention_forward.1} parent=1 // pred_region
      %725 = dma.done [#allocation3], 256
    $region21: #{cross_attention_forward.1} parent=1 // pred_fallthru
      _
    %726 = vsyncpa [#allocation3], 1

</llo_original>
